<compile_context>
chip_gen: v5e
topology: v5e:2x2
jax: 0.10.0
libtpu: 0.0.40
codegen_flags: <defaults>
</compile_context>

<pallas_src>
import functools

import jax
import jax.numpy as jnp
from jax import lax
from jax.experimental import pallas as pl
from jax.experimental.pallas import tpu as pltpu

_LANE = 128
_SUBLANE = 8


def _round_up(x, m):
    return ((x + m - 1) // m) * m


def _vmem_budget_for_device():
    """Per-generation VMEM working-set budget for the kernel."""
    kind = ""
    try:
        kind = jax.devices()[0].device_kind.lower()
    except Exception:  # pragma: no cover - defensive, keeps CPU tracing alive
        pass
    if "v7" in kind:
        return 24 << 20      # v7x: 64 MiB physical -> stay conservative
    if "v5" in kind or "v6" in kind:
        return 48 << 20      # v5e/v6e: 128 MiB physical -> big tiles amortize step overhead
    return 16 << 20          # unknown chip: stay under every default scoped limit


def _auto_tile_n(n, d, k, in_bytes, mm_bytes, budget):
    """Largest row tile whose (lane-padded) VMEM working set fits `budget`."""
    f32b = 4
    dl = _round_up(d, _LANE)                    # VMEM lane footprint of a D-wide row
    kl = _round_up(k, _LANE)                    # VMEM lane footprint of a K-wide row
    # Tile-independent residents: double-buffered codebook and 0.5*|e|^2 input
    # blocks, plus the tiny double-buffered cnt / sse output blocks.
    fixed = 2 * _round_up(k, _SUBLANE) * dl * mm_bytes
    fixed += 2 * _SUBLANE * kl * f32b
    fixed += 2 * _SUBLANE * (kl + dl) * f32b
    avail = budget - fixed
    # Per-row bytes: double-buffered x / q / idx pipeline blocks plus the
    # in-kernel temporaries (x_f32, xe/dist, iota, enc, q, diff^2 and the
    # MXU-dtype casts), all counted at their lane-padded widths.
    per_row = 2 * 2 * dl * in_bytes             # x in + q out, double-buffered
    per_row += 2 * _LANE * 4                    # idx column block, double-buffered
    per_row += f32b * (3 * dl + 3 * kl)         # x_f32, q, diff^2, xe/dist, iota, enc
    per_row += mm_bytes * (dl + kl)             # x and enc casts for the MXU
    if avail <= per_row * _SUBLANE:
        return _SUBLANE
    return int(min(avail // per_row, 4096))


def _vq_kernel(x_ref, e_ref, esqh_ref, q_ref, idx_ref, cnt_ref, sse_ref, *, n_valid):
    """One tile of rows: nearest-codebook lookup + per-step partial reductions.

    x_ref    : (TN, D)    flattened input rows (native dtype)
    e_ref    : (K, D)     codebook in the MXU dtype
    esqh_ref : (1, K)     0.5 * |e_k|^2  (f32)
    q_ref    : (TN, D)    quantized rows                        (output)
    idx_ref  : (TN, 1)    argmin code index, int32              (output)
    cnt_ref  : (1, 1, K)  per-step per-code counts              (output, per step)
    sse_ref  : (1, 1, D)  per-step column-wise sum of sq. error (output, per step)
    """
    i = pl.program_id(0)
    tn, d = x_ref.shape
    k = e_ref.shape[0]

    x_in = x_ref[...]
    e = e_ref[...]                                     # (K, D), MXU dtype
    x_f32 = x_in.astype(jnp.float32)
    x_mm = x_in.astype(e.dtype)

    # Reduced distance: argmin_k |x - e_k|^2 == argmin_k (0.5|e_k|^2 - x.e_k);
    # the per-row |x|^2 term is constant over k and dropped.
    xe = lax.dot_general(x_mm, e, (((1,), (1,)), ((), ())),
                         preferred_element_type=jnp.float32)       # (TN, K)  MXU
    dist = esqh_ref[...] - xe

    # First-index argmin (matches torch.argmin) using min-reductions only.
    col = lax.broadcasted_iota(jnp.int32, (tn, k), 1)
    min_val = jnp.min(dist, axis=1, keepdims=True)                 # (TN, 1)
    idx = jnp.min(jnp.where(dist == min_val, col, k), axis=1, keepdims=True)
    idx_ref[...] = idx

    # Codebook gather through the MXU (one-hot rows -> exact embedding rows).
    enc = (col == idx).astype(jnp.float32)                         # (TN, K)
    q = lax.dot_general(enc.astype(e.dtype), e, (((1,), (0,)), ((), ())),
                        preferred_element_type=jnp.float32)        # (TN, D)
    q_ref[...] = q.astype(q_ref.dtype)

    # Per-step partial reductions.  Rows beyond the real N are masked by a
    # (1, TN) validity vector folded into small MXU matmuls, so no elementwise
    # masking / sublane reduction tree is needed on the VPU/XLU.
    lane = lax.broadcasted_iota(jnp.int32, (1, tn), 1)
    valid = ((i * tn + lane) < n_valid).astype(jnp.float32)        # (1, TN)
    cnt = lax.dot_general(valid, enc, (((1,), (0,)), ((), ())),
                          preferred_element_type=jnp.float32)      # (1, K)
    diff = q - x_f32
    sse = lax.dot_general(valid, diff * diff, (((1,), (0,)), ((), ())),
                          preferred_element_type=jnp.float32)      # (1, D)
    cnt_ref[...] = cnt.reshape(1, 1, k)
    sse_ref[...] = sse.reshape(1, 1, d)


def vector_quantizer_forward(x_nchw, embedding, commitment_cost, *,
                             tile_n=None, matmul_dtype=None,
                             vmem_budget_bytes=None):
    """Forward of VectorQuantizer.

    x_nchw       : (B, C, H, W) with C == embedding_dim
    embedding    : (K, D) codebook
    matmul_dtype : dtype for the two MXU matmuls.  None -> follow the input
                   dtype (exact parity for f32 inputs).  On v5e/v6e pass
                   jnp.bfloat16 for the single-pass MXU path (near-tie argmin
                   flips possible vs an f32 reference).
    returns (loss, quantized_nchw, perplexity, encodings)
    """
    b, c, h, w = x_nchw.shape
    k, d = embedding.shape
    assert c == d, "channel dim must equal embedding_dim"

    # NCHW -> NHWC -> (N, D) (glue, stays in plain JAX; input dtype preserved).
    inputs_nhwc = jnp.transpose(x_nchw, (0, 2, 3, 1))
    in_dtype = inputs_nhwc.dtype
    flat = inputs_nhwc.reshape(-1, d)
    n = flat.shape[0]

    if matmul_dtype is None:
        mm_dtype = jnp.bfloat16 if in_dtype == jnp.bfloat16 else jnp.float32
    else:
        mm_dtype = jnp.dtype(matmul_dtype)
    in_bytes = jnp.dtype(in_dtype).itemsize
    mm_bytes = jnp.dtype(mm_dtype).itemsize

    budget = (vmem_budget_bytes if vmem_budget_bytes is not None
              else _vmem_budget_for_device())

    if tile_n is None:
        tile_n = _auto_tile_n(n, d, k, in_bytes, mm_bytes, budget)
        # Keep >=4 grid steps when N allows so dimension_semantics="parallel"
        # can spread work across both v7x TensorCores (>=2 is the hard floor).
        min_steps = 4 if n >= 4 * _SUBLANE else (2 if n >= 2 * _SUBLANE else 1)
        tile_n = min(tile_n, _round_up(-(-n // min_steps), _SUBLANE))
    tile_n = max(_SUBLANE, (int(tile_n) // _SUBLANE) * _SUBLANE)
    n_pad = _round_up(n, tile_n)
    grid = (n_pad // tile_n,)

    # Only row padding (to a tile_n multiple); no D/K padding in HBM.
    flat_p = flat if n_pad == n else jnp.pad(flat, ((0, n_pad - n), (0, 0)))

    emb_f32 = embedding.astype(jnp.float32)
    e_mm = embedding.astype(mm_dtype)
    e_sq_half = 0.5 * jnp.sum(emb_f32 * emb_f32, axis=1)[None, :]   # (1, K) f32

    kernel = functools.partial(_vq_kernel, n_valid=n)
    vmem_limit_bytes = max(32 << 20, budget + (8 << 20))

    q_pad, idx_pad, cnt_part, sse_part = pl.pallas_call(
        kernel,
        out_shape=(
            jax.ShapeDtypeStruct((n_pad, d), in_dtype),            # quantized rows
            jax.ShapeDtypeStruct((n_pad, 1), jnp.int32),           # argmin indices
            jax.ShapeDtypeStruct((grid[0], 1, k), jnp.float32),    # per-step counts
            jax.ShapeDtypeStruct((grid[0], 1, d), jnp.float32),    # per-step sq. error
        ),
        grid_spec=pltpu.PrefetchScalarGridSpec(
            num_scalar_prefetch=0,
            grid=grid,
            in_specs=[
                pl.BlockSpec((tile_n, d), lambda i: (i, 0)),       # input rows tile
                pl.BlockSpec((k, d), lambda i: (0, 0)),            # full codebook
                pl.BlockSpec((1, k), lambda i: (0, 0)),            # 0.5*|e|^2
            ],
            out_specs=[
                pl.BlockSpec((tile_n, d), lambda i: (i, 0)),
                pl.BlockSpec((tile_n, 1), lambda i: (i, 0)),
                pl.BlockSpec((1, 1, k), lambda i: (i, 0, 0)),
                pl.BlockSpec((1, 1, d), lambda i: (i, 0, 0)),
            ],
        ),
        compiler_params=pltpu.CompilerParams(
            # No cross-step state -> megacore-safe on v7x.
            dimension_semantics=("parallel",),
            vmem_limit_bytes=vmem_limit_bytes,
        ),
    )(flat_p, e_mm, e_sq_half)

    # ---- glue: reductions, losses, perplexity, straight-through, layout ----
    counts = jnp.sum(cnt_part, axis=(0, 1))                        # (K,)
    sse = jnp.sum(sse_part)
    mse = sse / jnp.float32(n * d)

    # Forward values of q_latent_loss and e_latent_loss coincide; they differ
    # only in gradient routing (detach), which is outside this forward kernel.
    # TODO(synk): custom VJP for straight-through / commitment gradients.
    loss = mse + commitment_cost * mse

    q_flat = q_pad if n_pad == n else q_pad[:n]
    quant_nhwc = q_flat.reshape(b, h, w, d)
    quant_st = inputs_nhwc + lax.stop_gradient(quant_nhwc - inputs_nhwc)
    quant_nchw = jnp.transpose(quant_st, (0, 3, 1, 2))

    idx_flat = (idx_pad if n_pad == n else idx_pad[:n])[:, 0]       # (N,) int32
    encodings = jax.nn.one_hot(idx_flat, k, dtype=jnp.float32)      # (N, K) f32

    avg_probs = counts / jnp.float32(n)
    perplexity = jnp.exp(-jnp.sum(avg_probs * jnp.log(avg_probs + 1e-10)))

    return loss, quant_nchw, perplexity, encodings


def _reference_jax(x_nchw, embedding, commitment_cost):
    """Pure-JAX reference mirroring the PyTorch forward."""
    k, d = embedding.shape
    inputs = jnp.transpose(x_nchw, (0, 2, 3, 1)).astype(jnp.float32)
    flat = inputs.reshape(-1, d)
    dist = (jnp.sum(flat ** 2, axis=1, keepdims=True)
            + jnp.sum(embedding ** 2, axis=1)
            - 2.0 * flat @ embedding.T)
    idx = jnp.argmin(dist, axis=1)
    enc = jax.nn.one_hot(idx, k, dtype=jnp.float32)
    quant = (enc @ embedding).reshape(inputs.shape)
    e_latent_loss = jnp.mean((lax.stop_gradient(quant) - inputs) ** 2)
    q_latent_loss = jnp.mean((quant - lax.stop_gradient(inputs)) ** 2)
    loss = q_latent_loss + commitment_cost * e_latent_loss
    quant_st = inputs + lax.stop_gradient(quant - inputs)
    avg_probs = jnp.mean(enc, axis=0)
    perplexity = jnp.exp(-jnp.sum(avg_probs * jnp.log(avg_probs + 1e-10)))
    return loss, jnp.transpose(quant_st, (0, 3, 1, 2)), perplexity, enc


if __name__ == "__main__":
    # Module hyper-params (small, consistent with the forward pass).
    num_embeddings = 16
    embedding_dim = 4
    commitment_cost = 0.25

    key = jax.random.PRNGKey(0)
    k_x, k_e = jax.random.split(key)

    # Input: NCHW conv activation, C == embedding_dim.
    x = jax.random.normal(k_x, (2, embedding_dim, 16, 16), dtype=jnp.float32)
    # Codebook init mirrors the module: uniform(-1/K, 1/K).
    embedding = jax.random.uniform(
        k_e, (num_embeddings, embedding_dim), dtype=jnp.float32,
        minval=-1.0 / num_embeddings, maxval=1.0 / num_embeddings)

    loss, quantized, perplexity, encodings = jax.block_until_ready(
        vector_quantizer_forward(x, embedding, commitment_cost))

    # Cross-check against a pure-JAX reference.
    loss_r, quant_r, perp_r, enc_r = _reference_jax(x, embedding, commitment_cost)
    assert jnp.allclose(loss, loss_r, atol=1e-5), (loss, loss_r)
    assert jnp.allclose(quantized, quant_r, atol=1e-5)
    assert jnp.allclose(perplexity, perp_r, atol=1e-4)
    assert jnp.allclose(encodings, enc_r)

    print("KERNEL_OK")
</pallas_src>

<mosaic_0001>
module attributes {stable_mosaic.version = 11 : i64} {
  func.func @_vq_kernel(%arg0: i32, %arg1: memref<128x4xf32, #tpu.memory_space<vmem>>, %arg2: memref<16x4xf32, #tpu.memory_space<vmem>>, %arg3: memref<1x16xf32, #tpu.memory_space<vmem>>, %arg4: memref<128x4xf32, #tpu.memory_space<vmem>>, %arg5: memref<128x1xi32, #tpu.memory_space<vmem>>, %arg6: memref<1x1x16xf32, #tpu.memory_space<vmem>>, %arg7: memref<1x1x4xf32, #tpu.memory_space<vmem>>) attributes {dimension_semantics = [#tpu.dimension_semantics<parallel>], iteration_bounds = array<i64: 4>, scalar_prefetch = 0 : i64, scratch_operands = 0 : i64, tpu.core_type = #tpu.core_type<tc>, window_params = [{transform_indices = @transform_0, window_bounds = array<i64: 128, 4>}, {pipeline_mode = #tpu.pipeline_mode<synchronous>, transform_indices = @transform_1, window_bounds = array<i64: 16, 4>}, {pipeline_mode = #tpu.pipeline_mode<synchronous>, transform_indices = @transform_2, window_bounds = array<i64: 1, 16>}, {transform_indices = @transform_3, window_bounds = array<i64: 128, 4>}, {transform_indices = @transform_4, window_bounds = array<i64: 128, 1>}, {transform_indices = @transform_5, window_bounds = array<i64: 1, 1, 16>}, {transform_indices = @transform_6, window_bounds = array<i64: 1, 1, 4>}]} {
    %c0 = arith.constant 0 : index
    %c0_0 = arith.constant 0 : index
    %0 = vector.load %arg1[%c0, %c0_0] : memref<128x4xf32, #tpu.memory_space<vmem>>, vector<128x4xf32>
    %c0_1 = arith.constant 0 : index
    %c0_2 = arith.constant 0 : index
    %1 = vector.load %arg2[%c0_1, %c0_2] : memref<16x4xf32, #tpu.memory_space<vmem>>, vector<16x4xf32>
    %cst = arith.constant dense<0.000000e+00> : vector<128x16xf32>
    %2 = tpu.matmul %0, %1, %cst {dimension_numbers = #tpu.dot_dimension_numbers<[1], [1], [0], [0], [0, 0, 1, 0], [], []>} : vector<128x4xf32>, vector<16x4xf32>, vector<128x16xf32> -> vector<128x16xf32>
    %c0_3 = arith.constant 0 : index
    %c0_4 = arith.constant 0 : index
    %3 = vector.load %arg3[%c0_3, %c0_4] : memref<1x16xf32, #tpu.memory_space<vmem>>, vector<1x16xf32>
    %4 = vector.broadcast %3 : vector<1x16xf32> to vector<128x16xf32>
    %5 = arith.subf %4, %2 : vector<128x16xf32>
    %6 = tpu.iota {dimensions = array<i32: 1>} : vector<128x16xi32>
    %cst_5 = arith.constant dense<0x7F800000> : vector<128xf32>
    %7 = vector.multi_reduction <minimumf>, %5, %cst_5 [1] : vector<128x16xf32> to vector<128xf32>
    %8 = vector.shape_cast %7 : vector<128xf32> to vector<128x1xf32>
    %9 = vector.broadcast %8 : vector<128x1xf32> to vector<128x16xf32>
    %10 = arith.cmpf oeq, %5, %9 : vector<128x16xf32>
    %c16_i32 = arith.constant 16 : i32
    %11 = vector.broadcast %c16_i32 : i32 to vector<128x16xi32>
    %12 = arith.select %10, %6, %11 : vector<128x16xi1>, vector<128x16xi32>
    %cst_6 = arith.constant dense<2147483647> : vector<128xi32>
    %13 = vector.multi_reduction <minsi>, %12, %cst_6 [1] : vector<128x16xi32> to vector<128xi32>
    %14 = vector.shape_cast %13 : vector<128xi32> to vector<128x1xi32>
    %c0_7 = arith.constant 0 : index
    %c0_8 = arith.constant 0 : index
    %15 = vector.load %arg5[%c0_7, %c0_8] : memref<128x1xi32, #tpu.memory_space<vmem>>, vector<128x1xi32>
    tpu.vector_store %arg5[%c0_7, %c0_8], %14 {strides = array<i32>} : memref<128x1xi32, #tpu.memory_space<vmem>>, vector<128x1xi32>,
    %16 = vector.broadcast %14 : vector<128x1xi32> to vector<128x16xi32>
    %17 = arith.cmpi eq, %6, %16 : vector<128x16xi32>
    %18 = arith.extui %17 : vector<128x16xi1> to vector<128x16xi32>
    %19 = arith.sitofp %18 : vector<128x16xi32> to vector<128x16xf32>
    %cst_9 = arith.constant dense<0.000000e+00> : vector<128x4xf32>
    %20 = tpu.matmul %19, %1, %cst_9 {dimension_numbers = #tpu.dot_dimension_numbers<[1], [0], [0], [1], [0, 0, 1, 1], [], []>} : vector<128x16xf32>, vector<16x4xf32>, vector<128x4xf32> -> vector<128x4xf32>
    %c0_10 = arith.constant 0 : index
    %c0_11 = arith.constant 0 : index
    %21 = vector.load %arg4[%c0_10, %c0_11] : memref<128x4xf32, #tpu.memory_space<vmem>>, vector<128x4xf32>
    tpu.vector_store %arg4[%c0_10, %c0_11], %20 {strides = array<i32>} : memref<128x4xf32, #tpu.memory_space<vmem>>, vector<128x4xf32>,
    %22 = tpu.iota {dimensions = array<i32: 1>} : vector<1x128xi32>
    %c128_i32 = arith.constant 128 : i32
    %23 = arith.muli %arg0, %c128_i32 : i32
    %24 = vector.broadcast %23 : i32 to vector<1x128xi32>
    %25 = arith.addi %24, %22 : vector<1x128xi32>
    %c512_i32 = arith.constant 512 : i32
    %26 = vector.broadcast %c512_i32 : i32 to vector<1x128xi32>
    %27 = arith.cmpi slt, %25, %26 : vector<1x128xi32>
    %28 = arith.extui %27 : vector<1x128xi1> to vector<1x128xi32>
    %29 = arith.sitofp %28 : vector<1x128xi32> to vector<1x128xf32>
    %cst_12 = arith.constant dense<0.000000e+00> : vector<1x16xf32>
    %30 = tpu.matmul %29, %19, %cst_12 {dimension_numbers = #tpu.dot_dimension_numbers<[1], [0], [0], [1], [0, 0, 1, 1], [], []>} : vector<1x128xf32>, vector<128x16xf32>, vector<1x16xf32> -> vector<1x16xf32>
    %31 = arith.subf %20, %0 : vector<128x4xf32>
    %32 = arith.mulf %31, %31 : vector<128x4xf32>
    %cst_13 = arith.constant dense<0.000000e+00> : vector<1x4xf32>
    %33 = tpu.matmul %29, %32, %cst_13 {dimension_numbers = #tpu.dot_dimension_numbers<[1], [0], [0], [1], [0, 0, 1, 1], [], []>} : vector<1x128xf32>, vector<128x4xf32>, vector<1x4xf32> -> vector<1x4xf32>
    %34 = vector.shape_cast %30 : vector<1x16xf32> to vector<1x1x16xf32>
    %c0_14 = arith.constant 0 : index
    %c0_15 = arith.constant 0 : index
    %c0_16 = arith.constant 0 : index
    %35 = vector.load %arg6[%c0_14, %c0_15, %c0_16] : memref<1x1x16xf32, #tpu.memory_space<vmem>>, vector<1x1x16xf32>
    tpu.vector_store %arg6[%c0_14, %c0_15, %c0_16], %34 {strides = array<i32>} : memref<1x1x16xf32, #tpu.memory_space<vmem>>, vector<1x1x16xf32>,
    %36 = vector.shape_cast %33 : vector<1x4xf32> to vector<1x1x4xf32>
    %c0_17 = arith.constant 0 : index
    %c0_18 = arith.constant 0 : index
    %c0_19 = arith.constant 0 : index
    %37 = vector.load %arg7[%c0_17, %c0_18, %c0_19] : memref<1x1x4xf32, #tpu.memory_space<vmem>>, vector<1x1x4xf32>
    tpu.vector_store %arg7[%c0_17, %c0_18, %c0_19], %36 {strides = array<i32>} : memref<1x1x4xf32, #tpu.memory_space<vmem>>, vector<1x1x4xf32>,
    return
  }
  func.func @transform_0(%arg0: i32) -> (i32, i32) {
    %c0_i32 = arith.constant 0 : i32
    %c0_i32_0 = arith.constant 0 : i32
    return %arg0, %c0_i32 : i32, i32
  }
  func.func @transform_1(%arg0: i32) -> (i32, i32) {
    %c0_i32 = arith.constant 0 : i32
    %c0_i32_0 = arith.constant 0 : i32
    %c0_i32_1 = arith.constant 0 : i32
    return %c0_i32, %c0_i32_0 : i32, i32
  }
  func.func @transform_2(%arg0: i32) -> (i32, i32) {
    %c0_i32 = arith.constant 0 : i32
    %c0_i32_0 = arith.constant 0 : i32
    %c0_i32_1 = arith.constant 0 : i32
    return %c0_i32, %c0_i32_0 : i32, i32
  }
  func.func @transform_3(%arg0: i32) -> (i32, i32) {
    %c0_i32 = arith.constant 0 : i32
    %c0_i32_0 = arith.constant 0 : i32
    return %arg0, %c0_i32 : i32, i32
  }
  func.func @transform_4(%arg0: i32) -> (i32, i32) {
    %c0_i32 = arith.constant 0 : i32
    %c0_i32_0 = arith.constant 0 : i32
    return %arg0, %c0_i32 : i32, i32
  }
  func.func @transform_5(%arg0: i32) -> (i32, i32, i32) {
    %c0_i32 = arith.constant 0 : i32
    %c0_i32_0 = arith.constant 0 : i32
    %c0_i32_1 = arith.constant 0 : i32
    return %arg0, %c0_i32, %c0_i32_0 : i32, i32, i32
  }
  func.func @transform_6(%arg0: i32) -> (i32, i32, i32) {
    %c0_i32 = arith.constant 0 : i32
    %c0_i32_0 = arith.constant 0 : i32
    %c0_i32_1 = arith.constant 0 : i32
    return %arg0, %c0_i32, %c0_i32_0 : i32, i32, i32
  }
}

</mosaic_0001>

<llo_original>
// kernel: tpu_custom_call.1
$region0: #{tpu_custom_call.1}
  #allocation0 [shape = 'u32[]', space=smem, size = 0x4, offset = 0x4, fixed_abs, tag = 'smem constant byte address 0x4 - core index']
  #allocation1 [shape = 'u32[72,128]{1,0:T(1,128)}', space=vmem, size = 0x9000, scoped, tag = 'internal scratch']
  %s0 = inlined_call_operand.vmem [shape: f32[512,4], index: 0, kind: input, shape index: {}]
  %s1 = inlined_call_operand.vmem [shape: f32[16,4], index: 1, kind: input, shape index: {}]
  %s2 = inlined_call_operand.vmem [shape: f32[1,16], index: 2, kind: input, shape index: {}]
  %s3 = inlined_call_operand.vmem [shape: f32[512,4], index: 3, kind: output, shape index: {0}]
  %s4 = inlined_call_operand.vmem [shape: s32[512,1], index: 4, kind: output, shape index: {1}]
  %s5 = inlined_call_operand.hbm [shape: f32[4,1,16], index: 5, kind: output, shape index: {2}]
  %s6 = inlined_call_operand.hbm [shape: f32[4,1,4], index: 6, kind: output, shape index: {3}]
  %7 = xla_tuple %s3, %s4, %s5, %s6
  %s8 = sld [smem:[#allocation0]]
  $region69: #{tpu_custom_call.1} parent=0
    _
  %s10 = ssub.s32 1, %s8
  %s11 = scalar_select 0, %s10, %s8
  $region1: #{tpu_custom_call.1} parent=0
    #allocation2 [shape = 'u8[1024]{0}', space=vmem, size = 0x400, scoped, tag = 'output window, operand 2']
    #allocation3 [shape = 's32[2]{0}', space=sflag, size = 0x8, scoped, tag = 'scoped memory for tpu_custom_call.1']
    #allocation4 [shape = 'u8[1024]{0}', space=vmem, size = 0x400, scoped, tag = 'output window, operand 3']
    #allocation5 [shape = 's32[2]{0}', space=sflag, size = 0x8, scoped, tag = 'scoped memory for tpu_custom_call.1']
    %12 = vsyncpa [#allocation3], 0
    %s13 = scalar_lea.sflag [#allocation3], 1
    %14 = vsyncpa %s13, 0
    %15 = vsyncpa [#allocation5], 0
    %s16 = scalar_lea.sflag [#allocation5], 1
    %17 = vsyncpa %s16, 0
    loop: start=0, step=1, limit=6
    $region2: #{tpu_custom_call.1} parent=1 // loop_pre_header
      _
    $region3: #{tpu_custom_call.1} parent=1 // loop_header
      %s19 = sphi 0, %s23
      %p20 = scmp.ge.s32.totalorder %s19, 6
      %s29 = sphi 0, %s31
      %s32 = sphi 0, %s29
      %s33 = sphi 0, %s32
      %s49 = sphi 0, %s33
      %s53 = sphi 0, %s53
      %s55 = sphi 0, %s53
      %s56 = sphi 0, %s55
      %s70 = sphi 0, %s56
      %s74 = sphi 0, %s74
      %s76 = sphi 0, %s74
      %s77 = sphi 0, %s76
      %s91 = sphi 0, %s77
      %s97 = sphi 0, %s99
      %s100 = sphi 0, %s97
      %s101 = sphi 0, %s100
      %s117 = sphi 0, %s101
      %s123 = sphi 0, %s125
      %s126 = sphi 0, %s123
      %s127 = sphi 0, %s126
      %s143 = sphi 0, %s127
      %s149 = sphi 0, %s151
      %s152 = sphi 0, %s149
      %s153 = sphi 0, %s152
      %s169 = sphi 0, %s153
      %s175 = sphi 0, %s177
      %s178 = sphi 0, %s175
      %s179 = sphi 0, %s178
      %s195 = sphi 0, %s179
    $region4: #{tpu_custom_call.1} parent=1 // loop_header_branch
      %22 = sbr.rel (%p20) target = $region8
    $region5: #{tpu_custom_call.1} parent=1 // loop_body
      %s24 = ssub.s32 %s19, 1
      %s25 = ssub.s32 %s19, 2
      %s26 = sadd.s32 %s19, 1
      %s27 = ssub.s32 %s19, %s26
      %p28 = scmp.eq.s32.totalorder %s27, 0
      %s30 = sadd.s32 %s29, 1
      %s31 = scalar_select %p28, %s29, %s30
      %p34 = pneg %p28
      %p35 = scmp.eq.s32.totalorder %s19, 3
      %p36 = por %p34, %p35
      %p37 = scmp.ne.s32.totalorder %s29, %s32
      %p38 = scmp.eq.s32.totalorder %s19, 0
      %p39 = por %p37, %p38
      %p40 = scmp.ne.s32.totalorder %s29, %s32
      %p41 = scmp.eq.s32.totalorder %s24, 3
      %p42 = por %p40, %p41
      %p43 = scmp.ne.s32.totalorder %s32, %s33
      %p44 = scmp.eq.s32.totalorder %s24, 0
      %p45 = por %p43, %p44
      %p46 = scmp.ne.s32.totalorder %s32, %s33
      %p47 = scmp.eq.s32.totalorder %s25, 3
      %p48 = por %p46, %p47
      %p50 = scmp.ne.s32.totalorder %s33, %s49
      %p51 = scmp.eq.s32.totalorder %s25, 0
      %p52 = por %p50, %p51
      %s54 = sadd.s32 %s53, 1
      %p57 = scmp.eq.s32.totalorder %s19, 3
      %p58 = scmp.ne.s32.totalorder %s53, %s55
      %p59 = scmp.eq.s32.totalorder %s19, 0
      %p60 = por %p58, %p59
      %p61 = scmp.ne.s32.totalorder %s53, %s55
      %p62 = scmp.eq.s32.totalorder %s24, 3
      %p63 = por %p61, %p62
      %p64 = scmp.ne.s32.totalorder %s55, %s56
      %p65 = scmp.eq.s32.totalorder %s24, 0
      %p66 = por %p64, %p65
      %p67 = scmp.ne.s32.totalorder %s55, %s56
      %p68 = scmp.eq.s32.totalorder %s25, 3
      %p69 = por %p67, %p68
      %p71 = scmp.ne.s32.totalorder %s56, %s70
      %p72 = scmp.eq.s32.totalorder %s25, 0
      %p73 = por %p71, %p72
      %s75 = sadd.s32 %s74, 1
      %p78 = scmp.eq.s32.totalorder %s19, 3
      %p79 = scmp.ne.s32.totalorder %s74, %s76
      %p80 = scmp.eq.s32.totalorder %s19, 0
      %p81 = por %p79, %p80
      %p82 = scmp.ne.s32.totalorder %s74, %s76
      %p83 = scmp.eq.s32.totalorder %s24, 3
      %p84 = por %p82, %p83
      %p85 = scmp.ne.s32.totalorder %s76, %s77
      %p86 = scmp.eq.s32.totalorder %s24, 0
      %p87 = por %p85, %p86
      %p88 = scmp.ne.s32.totalorder %s76, %s77
      %p89 = scmp.eq.s32.totalorder %s25, 3
      %p90 = por %p88, %p89
      %p92 = scmp.ne.s32.totalorder %s77, %s91
      %p93 = scmp.eq.s32.totalorder %s25, 0
      %p94 = por %p92, %p93
      %s95 = ssub.s32 %s19, %s26
      %p96 = scmp.eq.s32.totalorder %s95, 0
      %s98 = sadd.s32 %s97, 1
      %s99 = scalar_select %p96, %s97, %s98
      %p102 = pneg %p96
      %p103 = scmp.eq.s32.totalorder %s19, 3
      %p104 = por %p102, %p103
      %p105 = scmp.ne.s32.totalorder %s97, %s100
      %p106 = scmp.eq.s32.totalorder %s19, 0
      %p107 = por %p105, %p106
      %p108 = scmp.ne.s32.totalorder %s97, %s100
      %p109 = scmp.eq.s32.totalorder %s24, 3
      %p110 = por %p108, %p109
      %p111 = scmp.ne.s32.totalorder %s100, %s101
      %p112 = scmp.eq.s32.totalorder %s24, 0
      %p113 = por %p111, %p112
      %p114 = scmp.ne.s32.totalorder %s100, %s101
      %p115 = scmp.eq.s32.totalorder %s25, 3
      %p116 = por %p114, %p115
      %p118 = scmp.ne.s32.totalorder %s101, %s117
      %p119 = scmp.eq.s32.totalorder %s25, 0
      %p120 = por %p118, %p119
      %s121 = ssub.s32 %s19, %s26
      %p122 = scmp.eq.s32.totalorder %s121, 0
      %s124 = sadd.s32 %s123, 1
      %s125 = scalar_select %p122, %s123, %s124
      %p128 = pneg %p122
      %p129 = scmp.eq.s32.totalorder %s19, 3
      %p130 = por %p128, %p129
      %p131 = scmp.ne.s32.totalorder %s123, %s126
      %p132 = scmp.eq.s32.totalorder %s19, 0
      %p133 = por %p131, %p132
      %p134 = scmp.ne.s32.totalorder %s123, %s126
      %p135 = scmp.eq.s32.totalorder %s24, 3
      %p136 = por %p134, %p135
      %p137 = scmp.ne.s32.totalorder %s126, %s127
      %p138 = scmp.eq.s32.totalorder %s24, 0
      %p139 = por %p137, %p138
      %p140 = scmp.ne.s32.totalorder %s126, %s127
      %p141 = scmp.eq.s32.totalorder %s25, 3
      %p142 = por %p140, %p141
      %p144 = scmp.ne.s32.totalorder %s127, %s143
      %p145 = scmp.eq.s32.totalorder %s25, 0
      %p146 = por %p144, %p145
      %s147 = ssub.s32 %s19, %s26
      %p148 = scmp.eq.s32.totalorder %s147, 0
      %s150 = sadd.s32 %s149, 1
      %s151 = scalar_select %p148, %s149, %s150
      %p154 = pneg %p148
      %p155 = scmp.eq.s32.totalorder %s19, 3
      %p156 = por %p154, %p155
      %p157 = scmp.ne.s32.totalorder %s149, %s152
      %p158 = scmp.eq.s32.totalorder %s19, 0
      %p159 = por %p157, %p158
      %p160 = scmp.ne.s32.totalorder %s149, %s152
      %p161 = scmp.eq.s32.totalorder %s24, 3
      %p162 = por %p160, %p161
      %p163 = scmp.ne.s32.totalorder %s152, %s153
      %p164 = scmp.eq.s32.totalorder %s24, 0
      %p165 = por %p163, %p164
      %p166 = scmp.ne.s32.totalorder %s152, %s153
      %p167 = scmp.eq.s32.totalorder %s25, 3
      %p168 = por %p166, %p167
      %p170 = scmp.ne.s32.totalorder %s153, %s169
      %p171 = scmp.eq.s32.totalorder %s25, 0
      %p172 = por %p170, %p171
      %s173 = ssub.s32 %s19, %s26
      %p174 = scmp.eq.s32.totalorder %s173, 0
      %s176 = sadd.s32 %s175, 1
      %s177 = scalar_select %p174, %s175, %s176
      %p180 = pneg %p174
      %p181 = scmp.eq.s32.totalorder %s19, 3
      %p182 = por %p180, %p181
      %p183 = scmp.ne.s32.totalorder %s175, %s178
      %p184 = scmp.eq.s32.totalorder %s19, 0
      %p185 = por %p183, %p184
      %p186 = scmp.ne.s32.totalorder %s175, %s178
      %p187 = scmp.eq.s32.totalorder %s24, 3
      %p188 = por %p186, %p187
      %p189 = scmp.ne.s32.totalorder %s178, %s179
      %p190 = scmp.eq.s32.totalorder %s24, 0
      %p191 = por %p189, %p190
      %p192 = scmp.ne.s32.totalorder %s178, %s179
      %p193 = scmp.eq.s32.totalorder %s25, 3
      %p194 = por %p192, %p193
      %p196 = scmp.ne.s32.totalorder %s179, %s195
      %p197 = scmp.eq.s32.totalorder %s25, 0
      %p198 = por %p196, %p197
      %p199 = scmp.le.s32.totalorder 1, %s19
      %p200 = scmp.lt.s32.totalorder %s19, 5
      %p201 = pnand %p199, %p200
      %p202 = pneg %p201
      // Predicated region
      $region9: #{tpu_custom_call.1} parent=5 // pred_check
        _
      $region10: #{tpu_custom_call.1} parent=5 // pred_check_branch
        %204 = sbr.rel (%p201) target = $region12
      $region11: #{tpu_custom_call.1} parent=5 // pred_region
        %s205 = ssub.s32 %s19, 1
        // Predicated region
        $region13: #{tpu_custom_call.1} parent=11 // pred_check
          %p206 = pneg %p66
        $region14: #{tpu_custom_call.1} parent=11 // pred_check_branch
          %208 = sbr.rel (%p206) target = $region16
        $region15: #{tpu_custom_call.1} parent=11 // pred_region
          _
        $region16: #{tpu_custom_call.1} parent=11 // pred_fallthru
          _
        // Predicated region
        $region17: #{tpu_custom_call.1} parent=11 // pred_check
          %p209 = pneg %p87
        $region18: #{tpu_custom_call.1} parent=11 // pred_check_branch
          %211 = sbr.rel (%p209) target = $region20
        $region19: #{tpu_custom_call.1} parent=11 // pred_region
          _
        $region20: #{tpu_custom_call.1} parent=11 // pred_fallthru
          _
      $region12: #{tpu_custom_call.1} parent=5 // pred_fallthru
        _
      %p212 = scmp.lt.s32.totalorder %s19, 4
      // Predicated region
      $region21: #{tpu_custom_call.1} parent=5 // pred_check
        %p213 = pneg %p212
      $region22: #{tpu_custom_call.1} parent=5 // pred_check_branch
        %215 = sbr.rel (%p213) target = $region24
      $region23: #{tpu_custom_call.1} parent=5 // pred_region
        // Predicated region
        $region25: #{tpu_custom_call.1} parent=23 // pred_check
          %p216 = pneg %p39
        $region26: #{tpu_custom_call.1} parent=23 // pred_check_branch
          %218 = sbr.rel (%p216) target = $region28
        $region27: #{tpu_custom_call.1} parent=23 // pred_region
          %s219 = smul.u32 16, %s19
          %p220 = scmp.lt.s32.totalorder %s219, 63
          %s221 = scalar_select %p220, %s219, 63
          %s222 = smul.addr %s221, 8
          %s223 = scalar_lea.vmem %s0, %s222
          %s224 = smul.u32 16, %s19
        $region28: #{tpu_custom_call.1} parent=23 // pred_fallthru
          _
      $region24: #{tpu_custom_call.1} parent=5 // pred_fallthru
        _
      %p225 = scmp.le.s32.totalorder 1, %s19
      %p226 = scmp.lt.s32.totalorder %s19, 5
      %p227 = pnand %p225, %p226
      %p228 = pneg %p227
      // Predicated region
      $region29: #{tpu_custom_call.1} parent=5 // pred_check
        _
      $region30: #{tpu_custom_call.1} parent=5 // pred_check_branch
        %230 = sbr.rel (%p227) target = $region32
      $region31: #{tpu_custom_call.1} parent=5 // pred_region
        %s231 = ssub.s32 %s19, 1
        %s232 = smul.u32 16, %s24
        %p233 = scmp.lt.s32.totalorder %s232, 63
        %s234 = scalar_select %p233, %s232, 63
        %s235 = smul.addr %s234, 8
        %s236 = scalar_lea.vmem %s0, %s235
        %p237 = pneg %p45
        %p238 = pneg %p42
        %p239 = pneg %p66
        %p240 = pneg %p63
        %p241 = pneg %p87
        %p242 = pneg %p84
        %p243 = pneg %p113
        %p244 = pneg %p110
        %s245 = smul.u32 16, %s24
        %p246 = scmp.lt.s32.totalorder %s245, 63
        %s247 = scalar_select %p246, %s245, 63
        %s248 = smul.addr %s247, 8
        %s249 = scalar_lea.vmem %s3, %s248
        %p250 = pneg %p139
        %p251 = pneg %p136
        %s252 = smul.u32 16, %s24
        %p253 = scmp.lt.s32.totalorder %s252, 63
        %s254 = scalar_select %p253, %s252, 63
        %s255 = smul.addr %s254, 8
        %s256 = scalar_lea.vmem %s4, %s255
        %p257 = pneg %p165
        %p258 = pneg %p162
        %s259 = sand.u32 %s152, 1
        %s260 = scalar_lea.sflag [#allocation3], %s259
        %s261 = sand.u32 %s152, 1
        %s262 = scalar_lea.vmem [#allocation2], %s261
        %p263 = pneg %p191
        %p264 = pneg %p188
        %s265 = sand.u32 %s178, 1
        %s266 = scalar_lea.sflag [#allocation5], %s265
        %s267 = sand.u32 %s178, 1
        %s268 = scalar_lea.vmem [#allocation4], %s267
        %s269 = smul.u32 16, %s24
        %p270 = scmp.lt.s32.totalorder %s269, 63
        %s271 = scalar_select %p270, %s269, 63
        %s272 = smul.addr %s271, 8
        %s273 = scalar_lea.vmem %s0, %s272
        %s274 = smul.u32 16, %s24
        %s275 = smul.u32 16, %s24
        %p276 = scmp.lt.s32.totalorder %s275, 63
        %s277 = scalar_select %p276, %s275, 63
        %s278 = smul.addr %s277, 8
        %s279 = scalar_lea.vmem %s3, %s278
        %s280 = smul.u32 16, %s24
        %s281 = smul.u32 16, %s24
        %p282 = scmp.lt.s32.totalorder %s281, 63
        %s283 = scalar_select %p282, %s281, 63
        %s284 = smul.addr %s283, 8
        %s285 = scalar_lea.vmem %s4, %s284
        %s286 = smul.u32 16, %s24
        %v287 = vld [vmem:[%s273] sm:$0xff]
        %v288 = vld [vmem:[%s273 + $0x8] sm:$0xff]
        %v289 = vld [vmem:[%s273 + $0x10] sm:$0xff]
        %v290 = vld [vmem:[%s273 + $0x18] sm:$0xff]
        %v291 = vld [vmem:[%s273 + $0x20] sm:$0xff]
        %v292 = vld [vmem:[%s273 + $0x28] sm:$0xff]
        %v293 = vld [vmem:[%s273 + $0x30] sm:$0xff]
        %v294 = vld [vmem:[%s273 + $0x38] sm:$0xff]
        %v295 = vld [vmem:[%s273 + $0x40] sm:$0xff]
        %v296 = vld [vmem:[%s273 + $0x48] sm:$0xff]
        %v297 = vld [vmem:[%s273 + $0x50] sm:$0xff]
        %v298 = vld [vmem:[%s273 + $0x58] sm:$0xff]
        %v299 = vld [vmem:[%s273 + $0x60] sm:$0xff]
        %v300 = vld [vmem:[%s273 + $0x68] sm:$0xff]
        %v301 = vld [vmem:[%s273 + $0x70] sm:$0xff]
        %v302 = vld [vmem:[%s273 + $0x78] sm:$0xff]
        %v303 = vld [vmem:[%s1] sm:$0xff]
        %v304 = vld [vmem:[%s1 + $0x8] sm:$0xff]
        %vm305 = vcmask 31744
        %v307 = vsel %vm305, %v287, 0
        %v310 = vsel %vm305, %v288, 0
        %v313 = vsel %vm305, %v289, 0
        %v316 = vsel %vm305, %v290, 0
        %v319 = vsel %vm305, %v291, 0
        %v322 = vsel %vm305, %v292, 0
        %v325 = vsel %vm305, %v293, 0
        %v328 = vsel %vm305, %v294, 0
        %v331 = vsel %vm305, %v295, 0
        %v334 = vsel %vm305, %v296, 0
        %v337 = vsel %vm305, %v297, 0
        %v340 = vsel %vm305, %v298, 0
        %v343 = vsel %vm305, %v299, 0
        %v346 = vsel %vm305, %v300, 0
        %v349 = vsel %vm305, %v301, 0
        %v352 = vsel %vm305, %v302, 0
        %v355 = vsel %vm305, %v303, 0
        %v358 = vsel %vm305, %v304, 0
        %360 = vmatpush.xpose.msra.mxu0 0.0
        %361 = vmatpush.xpose.msra.mxu0 0.0
        %362 = vmatpush.xpose.msra.mxu0 0.0
        %363 = vmatpush.xpose.msra.mxu0 0.0
        %364 = vmatpush.xpose.msra.mxu0 0.0
        %365 = vmatpush.xpose.msra.mxu0 0.0
        %366 = vmatpush.xpose.msra.mxu0 0.0
        %367 = vmatpush.xpose.msra.mxu0 0.0
        %368 = vmatpush.xpose.msra.mxu0 0.0
        %369 = vmatpush.xpose.msra.mxu0 0.0
        %370 = vmatpush.xpose.msra.mxu0 0.0
        %371 = vmatpush.xpose.msra.mxu0 0.0
        %372 = vmatpush.xpose.msra.mxu0 0.0
        %373 = vmatpush.xpose.msra.mxu0 0.0
        %374 = vmatpush.xpose.msra.mxu0 %v358
        %375 = vmatpush.xpose.msra.mxu0 %v355
        %376 = vmatmul.f32.gmra.mxu0 %v307
        %v377 = vpop.f32.mrf.mxu0
        %v378 = vadd.f32 0.0, %v377
        %379 = vmatmul.f32.gmra.mxu0 %v310
        %v380 = vpop.f32.mrf.mxu0
        %v381 = vadd.f32 0.0, %v380
        %382 = vmatmul.f32.gmra.mxu0 %v313
        %v383 = vpop.f32.mrf.mxu0
        %v384 = vadd.f32 0.0, %v383
        %385 = vmatmul.f32.gmra.mxu0 %v316
        %v386 = vpop.f32.mrf.mxu0
        %v387 = vadd.f32 0.0, %v386
        %388 = vmatmul.f32.gmra.mxu0 %v319
        %v389 = vpop.f32.mrf.mxu0
        %v390 = vadd.f32 0.0, %v389
        %391 = vmatmul.f32.gmra.mxu0 %v322
        %v392 = vpop.f32.mrf.mxu0
        %v393 = vadd.f32 0.0, %v392
        %394 = vmatmul.f32.gmra.mxu0 %v325
        %v395 = vpop.f32.mrf.mxu0
        %v396 = vadd.f32 0.0, %v395
        %397 = vmatmul.f32.gmra.mxu0 %v328
        %v398 = vpop.f32.mrf.mxu0
        %v399 = vadd.f32 0.0, %v398
        %400 = vmatmul.f32.gmra.mxu0 %v331
        %v401 = vpop.f32.mrf.mxu0
        %v402 = vadd.f32 0.0, %v401
        %403 = vmatmul.f32.gmra.mxu0 %v334
        %v404 = vpop.f32.mrf.mxu0
        %v405 = vadd.f32 0.0, %v404
        %406 = vmatmul.f32.gmra.mxu0 %v337
        %v407 = vpop.f32.mrf.mxu0
        %v408 = vadd.f32 0.0, %v407
        %409 = vmatmul.f32.gmra.mxu0 %v340
        %v410 = vpop.f32.mrf.mxu0
        %v411 = vadd.f32 0.0, %v410
        %412 = vmatmul.f32.gmra.mxu0 %v343
        %v413 = vpop.f32.mrf.mxu0
        %v414 = vadd.f32 0.0, %v413
        %415 = vmatmul.f32.gmra.mxu0 %v346
        %v416 = vpop.f32.mrf.mxu0
        %v417 = vadd.f32 0.0, %v416
        %418 = vmatmul.f32.gmra.mxu0 %v349
        %v419 = vpop.f32.mrf.mxu0
        %v420 = vadd.f32 0.0, %v419
        %421 = vmatmul.f32.gmra.mxu0 %v352
        %v422 = vpop.f32.mrf.mxu0
        %v423 = vadd.f32 0.0, %v422
        %424 = vdwg.mxu0
        %v425 = vld [vmem:[%s2] sm:$0x1]
        %v427 = vperm.slane %v425, 0
        %v429 = vsub.f32 %v427, %v378
        %v430 = vsub.f32 %v427, %v381
        %v431 = vsub.f32 %v427, %v384
        %v432 = vsub.f32 %v427, %v387
        %v433 = vsub.f32 %v427, %v390
        %v434 = vsub.f32 %v427, %v393
        %v435 = vsub.f32 %v427, %v396
        %v436 = vsub.f32 %v427, %v399
        %v437 = vsub.f32 %v427, %v402
        %v438 = vsub.f32 %v427, %v405
        %v439 = vsub.f32 %v427, %v408
        %v440 = vsub.f32 %v427, %v411
        %v441 = vsub.f32 %v427, %v414
        %v442 = vsub.f32 %v427, %v417
        %v443 = vsub.f32 %v427, %v420
        %v444 = vsub.f32 %v427, %v423
        %v445 = vlaneseq
        %v446 = vand.u32 %v445, 127
        %vm447 = vcmask 130048
        %v448 = vsel %vm447, %v429, inf
        %449 = vmin.xlane.f32.xlu0 %v448
        %v450 = vpop.xlane.xlu0 %449
        %v451 = vsel %vm447, %v430, inf
        %452 = vmin.xlane.f32.xlu0 %v451
        %v453 = vpop.xlane.xlu0 %452
        %v454 = vsel %vm447, %v431, inf
        %455 = vmin.xlane.f32.xlu0 %v454
        %v456 = vpop.xlane.xlu0 %455
        %v457 = vsel %vm447, %v432, inf
        %458 = vmin.xlane.f32.xlu0 %v457
        %v459 = vpop.xlane.xlu0 %458
        %v460 = vsel %vm447, %v433, inf
        %461 = vmin.xlane.f32.xlu0 %v460
        %v462 = vpop.xlane.xlu0 %461
        %v463 = vsel %vm447, %v434, inf
        %464 = vmin.xlane.f32.xlu0 %v463
        %v465 = vpop.xlane.xlu0 %464
        %v466 = vsel %vm447, %v435, inf
        %467 = vmin.xlane.f32.xlu0 %v466
        %v468 = vpop.xlane.xlu0 %467
        %v469 = vsel %vm447, %v436, inf
        %470 = vmin.xlane.f32.xlu0 %v469
        %v471 = vpop.xlane.xlu0 %470
        %v472 = vsel %vm447, %v437, inf
        %473 = vmin.xlane.f32.xlu0 %v472
        %v474 = vpop.xlane.xlu0 %473
        %v475 = vsel %vm447, %v438, inf
        %476 = vmin.xlane.f32.xlu0 %v475
        %v477 = vpop.xlane.xlu0 %476
        %v478 = vsel %vm447, %v439, inf
        %479 = vmin.xlane.f32.xlu0 %v478
        %v480 = vpop.xlane.xlu0 %479
        %v481 = vsel %vm447, %v440, inf
        %482 = vmin.xlane.f32.xlu0 %v481
        %v483 = vpop.xlane.xlu0 %482
        %v484 = vsel %vm447, %v441, inf
        %485 = vmin.xlane.f32.xlu0 %v484
        %v486 = vpop.xlane.xlu0 %485
        %v487 = vsel %vm447, %v442, inf
        %488 = vmin.xlane.f32.xlu0 %v487
        %v489 = vpop.xlane.xlu0 %488
        %v490 = vsel %vm447, %v443, inf
        %491 = vmin.xlane.f32.xlu0 %v490
        %v492 = vpop.xlane.xlu0 %491
        %v493 = vsel %vm447, %v444, inf
        %494 = vmin.xlane.f32.xlu0 %v493
        %v495 = vpop.xlane.xlu0 %494
        %vm496 = vcmp.eq.f32.partialorder %v429, %v450
        %vm497 = vcmp.eq.f32.partialorder %v430, %v453
        %vm498 = vcmp.eq.f32.partialorder %v431, %v456
        %vm499 = vcmp.eq.f32.partialorder %v432, %v459
        %vm500 = vcmp.eq.f32.partialorder %v433, %v462
        %vm501 = vcmp.eq.f32.partialorder %v434, %v465
        %vm502 = vcmp.eq.f32.partialorder %v435, %v468
        %vm503 = vcmp.eq.f32.partialorder %v436, %v471
        %vm504 = vcmp.eq.f32.partialorder %v437, %v474
        %vm505 = vcmp.eq.f32.partialorder %v438, %v477
        %vm506 = vcmp.eq.f32.partialorder %v439, %v480
        %vm507 = vcmp.eq.f32.partialorder %v440, %v483
        %vm508 = vcmp.eq.f32.partialorder %v441, %v486
        %vm509 = vcmp.eq.f32.partialorder %v442, %v489
        %vm510 = vcmp.eq.f32.partialorder %v443, %v492
        %vm511 = vcmp.eq.f32.partialorder %v444, %v495
        %v512 = vsel %vm496, %v446, 16
        %v513 = vsel %vm497, %v446, 16
        %v514 = vsel %vm498, %v446, 16
        %v515 = vsel %vm499, %v446, 16
        %v516 = vsel %vm500, %v446, 16
        %v517 = vsel %vm501, %v446, 16
        %v518 = vsel %vm502, %v446, 16
        %v519 = vsel %vm503, %v446, 16
        %v520 = vsel %vm504, %v446, 16
        %v521 = vsel %vm505, %v446, 16
        %v522 = vsel %vm506, %v446, 16
        %v523 = vsel %vm507, %v446, 16
        %v524 = vsel %vm508, %v446, 16
        %v525 = vsel %vm509, %v446, 16
        %v526 = vsel %vm510, %v446, 16
        %v527 = vsel %vm511, %v446, 16
        %v528 = vsel %vm447, %v512, 2147483647
        %v529 = vand.u32 %v528, 65535
        %v530 = vshra.s32 %v528, 16
        %v531 = vcvt.s32.f32 %v529
        %v532 = vcvt.s32.f32 %v530
        %533 = vmin.xlane.f32.xlu0 %v532
        %v534 = vpop.xlane.xlu0 %533
        %vm535 = vcmp.eq.f32.partialorder %v532, %v534
        %v536 = vsel %vm535, %v531, inf
        %537 = vmin.xlane.f32.xlu0 %v536
        %v538 = vpop.xlane.xlu0 %537
        %v539 = vcvt.f32.s32 %v538
        %v540 = vcvt.f32.s32 %v534
        %v541 = vshll.u32 %v540, 16
        %v542 = vadd.s32 %v541, %v539
        %v543 = vsel %vm447, %v513, 2147483647
        %v544 = vand.u32 %v543, 65535
        %v545 = vshra.s32 %v543, 16
        %v546 = vcvt.s32.f32 %v544
        %v547 = vcvt.s32.f32 %v545
        %548 = vmin.xlane.f32.xlu0 %v547
        %v549 = vpop.xlane.xlu0 %548
        %vm550 = vcmp.eq.f32.partialorder %v547, %v549
        %v551 = vsel %vm550, %v546, inf
        %552 = vmin.xlane.f32.xlu0 %v551
        %v553 = vpop.xlane.xlu0 %552
        %v554 = vcvt.f32.s32 %v553
        %v555 = vcvt.f32.s32 %v549
        %v556 = vshll.u32 %v555, 16
        %v557 = vadd.s32 %v556, %v554
        %v558 = vsel %vm447, %v514, 2147483647
        %v559 = vand.u32 %v558, 65535
        %v560 = vshra.s32 %v558, 16
        %v561 = vcvt.s32.f32 %v559
        %v562 = vcvt.s32.f32 %v560
        %563 = vmin.xlane.f32.xlu0 %v562
        %v564 = vpop.xlane.xlu0 %563
        %vm565 = vcmp.eq.f32.partialorder %v562, %v564
        %v566 = vsel %vm565, %v561, inf
        %567 = vmin.xlane.f32.xlu0 %v566
        %v568 = vpop.xlane.xlu0 %567
        %v569 = vcvt.f32.s32 %v568
        %v570 = vcvt.f32.s32 %v564
        %v571 = vshll.u32 %v570, 16
        %v572 = vadd.s32 %v571, %v569
        %v573 = vsel %vm447, %v515, 2147483647
        %v574 = vand.u32 %v573, 65535
        %v575 = vshra.s32 %v573, 16
        %v576 = vcvt.s32.f32 %v574
        %v577 = vcvt.s32.f32 %v575
        %578 = vmin.xlane.f32.xlu0 %v577
        %v579 = vpop.xlane.xlu0 %578
        %vm580 = vcmp.eq.f32.partialorder %v577, %v579
        %v581 = vsel %vm580, %v576, inf
        %582 = vmin.xlane.f32.xlu0 %v581
        %v583 = vpop.xlane.xlu0 %582
        %v584 = vcvt.f32.s32 %v583
        %v585 = vcvt.f32.s32 %v579
        %v586 = vshll.u32 %v585, 16
        %v587 = vadd.s32 %v586, %v584
        %v588 = vsel %vm447, %v516, 2147483647
        %v589 = vand.u32 %v588, 65535
        %v590 = vshra.s32 %v588, 16
        %v591 = vcvt.s32.f32 %v589
        %v592 = vcvt.s32.f32 %v590
        %593 = vmin.xlane.f32.xlu0 %v592
        %v594 = vpop.xlane.xlu0 %593
        %vm595 = vcmp.eq.f32.partialorder %v592, %v594
        %v596 = vsel %vm595, %v591, inf
        %597 = vmin.xlane.f32.xlu0 %v596
        %v598 = vpop.xlane.xlu0 %597
        %v599 = vcvt.f32.s32 %v598
        %v600 = vcvt.f32.s32 %v594
        %v601 = vshll.u32 %v600, 16
        %v602 = vadd.s32 %v601, %v599
        %v603 = vsel %vm447, %v517, 2147483647
        %v604 = vand.u32 %v603, 65535
        %v605 = vshra.s32 %v603, 16
        %v606 = vcvt.s32.f32 %v604
        %v607 = vcvt.s32.f32 %v605
        %608 = vmin.xlane.f32.xlu0 %v607
        %v609 = vpop.xlane.xlu0 %608
        %vm610 = vcmp.eq.f32.partialorder %v607, %v609
        %v611 = vsel %vm610, %v606, inf
        %612 = vmin.xlane.f32.xlu0 %v611
        %v613 = vpop.xlane.xlu0 %612
        %v614 = vcvt.f32.s32 %v613
        %v615 = vcvt.f32.s32 %v609
        %v616 = vshll.u32 %v615, 16
        %v617 = vadd.s32 %v616, %v614
        %v618 = vsel %vm447, %v518, 2147483647
        %v619 = vand.u32 %v618, 65535
        %v620 = vshra.s32 %v618, 16
        %v621 = vcvt.s32.f32 %v619
        %v622 = vcvt.s32.f32 %v620
        %623 = vmin.xlane.f32.xlu0 %v622
        %v624 = vpop.xlane.xlu0 %623
        %vm625 = vcmp.eq.f32.partialorder %v622, %v624
        %v626 = vsel %vm625, %v621, inf
        %627 = vmin.xlane.f32.xlu0 %v626
        %v628 = vpop.xlane.xlu0 %627
        %v629 = vcvt.f32.s32 %v628
        %v630 = vcvt.f32.s32 %v624
        %v631 = vshll.u32 %v630, 16
        %v632 = vadd.s32 %v631, %v629
        %v633 = vsel %vm447, %v519, 2147483647
        %v634 = vand.u32 %v633, 65535
        %v635 = vshra.s32 %v633, 16
        %v636 = vcvt.s32.f32 %v634
        %v637 = vcvt.s32.f32 %v635
        %638 = vmin.xlane.f32.xlu0 %v637
        %v639 = vpop.xlane.xlu0 %638
        %vm640 = vcmp.eq.f32.partialorder %v637, %v639
        %v641 = vsel %vm640, %v636, inf
        %642 = vmin.xlane.f32.xlu0 %v641
        %v643 = vpop.xlane.xlu0 %642
        %v644 = vcvt.f32.s32 %v643
        %v645 = vcvt.f32.s32 %v639
        %v646 = vshll.u32 %v645, 16
        %v647 = vadd.s32 %v646, %v644
        %v648 = vsel %vm447, %v520, 2147483647
        %v649 = vand.u32 %v648, 65535
        %v650 = vshra.s32 %v648, 16
        %v651 = vcvt.s32.f32 %v649
        %v652 = vcvt.s32.f32 %v650
        %653 = vmin.xlane.f32.xlu0 %v652
        %v654 = vpop.xlane.xlu0 %653
        %vm655 = vcmp.eq.f32.partialorder %v652, %v654
        %v656 = vsel %vm655, %v651, inf
        %657 = vmin.xlane.f32.xlu0 %v656
        %v658 = vpop.xlane.xlu0 %657
        %v659 = vcvt.f32.s32 %v658
        %v660 = vcvt.f32.s32 %v654
        %v661 = vshll.u32 %v660, 16
        %v662 = vadd.s32 %v661, %v659
        %v663 = vsel %vm447, %v521, 2147483647
        %v664 = vand.u32 %v663, 65535
        %v665 = vshra.s32 %v663, 16
        %v666 = vcvt.s32.f32 %v664
        %v667 = vcvt.s32.f32 %v665
        %668 = vmin.xlane.f32.xlu0 %v667
        %v669 = vpop.xlane.xlu0 %668
        %vm670 = vcmp.eq.f32.partialorder %v667, %v669
        %v671 = vsel %vm670, %v666, inf
        %672 = vmin.xlane.f32.xlu0 %v671
        %v673 = vpop.xlane.xlu0 %672
        %v674 = vcvt.f32.s32 %v673
        %v675 = vcvt.f32.s32 %v669
        %v676 = vshll.u32 %v675, 16
        %v677 = vadd.s32 %v676, %v674
        %v678 = vsel %vm447, %v522, 2147483647
        %v679 = vand.u32 %v678, 65535
        %v680 = vshra.s32 %v678, 16
        %v681 = vcvt.s32.f32 %v679
        %v682 = vcvt.s32.f32 %v680
        %683 = vmin.xlane.f32.xlu0 %v682
        %v684 = vpop.xlane.xlu0 %683
        %vm685 = vcmp.eq.f32.partialorder %v682, %v684
        %v686 = vsel %vm685, %v681, inf
        %687 = vmin.xlane.f32.xlu0 %v686
        %v688 = vpop.xlane.xlu0 %687
        %v689 = vcvt.f32.s32 %v688
        %v690 = vcvt.f32.s32 %v684
        %v691 = vshll.u32 %v690, 16
        %v692 = vadd.s32 %v691, %v689
        %v693 = vsel %vm447, %v523, 2147483647
        %v694 = vand.u32 %v693, 65535
        %v695 = vshra.s32 %v693, 16
        %v696 = vcvt.s32.f32 %v694
        %v697 = vcvt.s32.f32 %v695
        %698 = vmin.xlane.f32.xlu0 %v697
        %v699 = vpop.xlane.xlu0 %698
        %vm700 = vcmp.eq.f32.partialorder %v697, %v699
        %v701 = vsel %vm700, %v696, inf
        %702 = vmin.xlane.f32.xlu0 %v701
        %v703 = vpop.xlane.xlu0 %702
        %v704 = vcvt.f32.s32 %v703
        %v705 = vcvt.f32.s32 %v699
        %v706 = vshll.u32 %v705, 16
        %v707 = vadd.s32 %v706, %v704
        %v708 = vsel %vm447, %v524, 2147483647
        %v709 = vand.u32 %v708, 65535
        %v710 = vshra.s32 %v708, 16
        %v711 = vcvt.s32.f32 %v709
        %v712 = vcvt.s32.f32 %v710
        %713 = vmin.xlane.f32.xlu0 %v712
        %v714 = vpop.xlane.xlu0 %713
        %vm715 = vcmp.eq.f32.partialorder %v712, %v714
        %v716 = vsel %vm715, %v711, inf
        %717 = vmin.xlane.f32.xlu0 %v716
        %v718 = vpop.xlane.xlu0 %717
        %v719 = vcvt.f32.s32 %v718
        %v720 = vcvt.f32.s32 %v714
        %v721 = vshll.u32 %v720, 16
        %v722 = vadd.s32 %v721, %v719
        %v723 = vsel %vm447, %v525, 2147483647
        %v724 = vand.u32 %v723, 65535
        %v725 = vshra.s32 %v723, 16
        %v726 = vcvt.s32.f32 %v724
        %v727 = vcvt.s32.f32 %v725
        %728 = vmin.xlane.f32.xlu0 %v727
        %v729 = vpop.xlane.xlu0 %728
        %vm730 = vcmp.eq.f32.partialorder %v727, %v729
        %v731 = vsel %vm730, %v726, inf
        %732 = vmin.xlane.f32.xlu0 %v731
        %v733 = vpop.xlane.xlu0 %732
        %v734 = vcvt.f32.s32 %v733
        %v735 = vcvt.f32.s32 %v729
        %v736 = vshll.u32 %v735, 16
        %v737 = vadd.s32 %v736, %v734
        %v738 = vsel %vm447, %v526, 2147483647
        %v739 = vand.u32 %v738, 65535
        %v740 = vshra.s32 %v738, 16
        %v741 = vcvt.s32.f32 %v739
        %v742 = vcvt.s32.f32 %v740
        %743 = vmin.xlane.f32.xlu0 %v742
        %v744 = vpop.xlane.xlu0 %743
        %vm745 = vcmp.eq.f32.partialorder %v742, %v744
        %v746 = vsel %vm745, %v741, inf
        %747 = vmin.xlane.f32.xlu0 %v746
        %v748 = vpop.xlane.xlu0 %747
        %v749 = vcvt.f32.s32 %v748
        %v750 = vcvt.f32.s32 %v744
        %v751 = vshll.u32 %v750, 16
        %v752 = vadd.s32 %v751, %v749
        %v753 = vsel %vm447, %v527, 2147483647
        %v754 = vand.u32 %v753, 65535
        %v755 = vshra.s32 %v753, 16
        %v756 = vcvt.s32.f32 %v754
        %v757 = vcvt.s32.f32 %v755
        %758 = vmin.xlane.f32.xlu0 %v757
        %v759 = vpop.xlane.xlu0 %758
        %vm760 = vcmp.eq.f32.partialorder %v757, %v759
        %v761 = vsel %vm760, %v756, inf
        %762 = vmin.xlane.f32.xlu0 %v761
        %v763 = vpop.xlane.xlu0 %762
        %v764 = vcvt.f32.s32 %v763
        %v765 = vcvt.f32.s32 %v759
        %v766 = vshll.u32 %v765, 16
        %v767 = vadd.s32 %v766, %v764
        %vm768 = vcmask 7168
        %769 = vst.msk [vmem:[%s285] sm:$0xff] %vm768, %v542
        %770 = vst.msk [vmem:[%s285 + $0x8] sm:$0xff] %vm768, %v557
        %771 = vst.msk [vmem:[%s285 + $0x10] sm:$0xff] %vm768, %v572
        %772 = vst.msk [vmem:[%s285 + $0x18] sm:$0xff] %vm768, %v587
        %773 = vst.msk [vmem:[%s285 + $0x20] sm:$0xff] %vm768, %v602
        %774 = vst.msk [vmem:[%s285 + $0x28] sm:$0xff] %vm768, %v617
        %775 = vst.msk [vmem:[%s285 + $0x30] sm:$0xff] %vm768, %v632
        %776 = vst.msk [vmem:[%s285 + $0x38] sm:$0xff] %vm768, %v647
        %777 = vst.msk [vmem:[%s285 + $0x40] sm:$0xff] %vm768, %v662
        %778 = vst.msk [vmem:[%s285 + $0x48] sm:$0xff] %vm768, %v677
        %779 = vst.msk [vmem:[%s285 + $0x50] sm:$0xff] %vm768, %v692
        %780 = vst.msk [vmem:[%s285 + $0x58] sm:$0xff] %vm768, %v707
        %781 = vst.msk [vmem:[%s285 + $0x60] sm:$0xff] %vm768, %v722
        %782 = vst.msk [vmem:[%s285 + $0x68] sm:$0xff] %vm768, %v737
        %783 = vst.msk [vmem:[%s285 + $0x70] sm:$0xff] %vm768, %v752
        %784 = vst.msk [vmem:[%s285 + $0x78] sm:$0xff] %vm768, %v767
        %vm785 = vcmp.eq.s32.totalorder %v446, %v542
        %vm786 = vcmp.eq.s32.totalorder %v446, %v557
        %vm787 = vcmp.eq.s32.totalorder %v446, %v572
        %vm788 = vcmp.eq.s32.totalorder %v446, %v587
        %vm789 = vcmp.eq.s32.totalorder %v446, %v602
        %vm790 = vcmp.eq.s32.totalorder %v446, %v617
        %vm791 = vcmp.eq.s32.totalorder %v446, %v632
        %vm792 = vcmp.eq.s32.totalorder %v446, %v647
        %vm793 = vcmp.eq.s32.totalorder %v446, %v662
        %vm794 = vcmp.eq.s32.totalorder %v446, %v677
        %vm795 = vcmp.eq.s32.totalorder %v446, %v692
        %vm796 = vcmp.eq.s32.totalorder %v446, %v707
        %vm797 = vcmp.eq.s32.totalorder %v446, %v722
        %vm798 = vcmp.eq.s32.totalorder %v446, %v737
        %vm799 = vcmp.eq.s32.totalorder %v446, %v752
        %vm800 = vcmp.eq.s32.totalorder %v446, %v767
        %v801 = vsel %vm785, 1, 0
        %v802 = vsel %vm786, 1, 0
        %v803 = vsel %vm787, 1, 0
        %v804 = vsel %vm788, 1, 0
        %v805 = vsel %vm789, 1, 0
        %v806 = vsel %vm790, 1, 0
        %v807 = vsel %vm791, 1, 0
        %v808 = vsel %vm792, 1, 0
        %v809 = vsel %vm793, 1, 0
        %v810 = vsel %vm794, 1, 0
        %v811 = vsel %vm795, 1, 0
        %v812 = vsel %vm796, 1, 0
        %v813 = vsel %vm797, 1, 0
        %v814 = vsel %vm798, 1, 0
        %v815 = vsel %vm799, 1, 0
        %v816 = vsel %vm800, 1, 0
        %v817 = vcvt.s32.f32 %v801
        %v818 = vcvt.s32.f32 %v802
        %v819 = vcvt.s32.f32 %v803
        %v820 = vcvt.s32.f32 %v804
        %v821 = vcvt.s32.f32 %v805
        %v822 = vcvt.s32.f32 %v806
        %v823 = vcvt.s32.f32 %v807
        %v824 = vcvt.s32.f32 %v808
        %v825 = vcvt.s32.f32 %v809
        %v826 = vcvt.s32.f32 %v810
        %v827 = vcvt.s32.f32 %v811
        %v828 = vcvt.s32.f32 %v812
        %v829 = vcvt.s32.f32 %v813
        %v830 = vcvt.s32.f32 %v814
        %v831 = vcvt.s32.f32 %v815
        %v832 = vcvt.s32.f32 %v816
        %v834 = vsel %vm447, %v817, 0
        %v837 = vsel %vm447, %v818, 0
        %v840 = vsel %vm447, %v819, 0
        %v843 = vsel %vm447, %v820, 0
        %v846 = vsel %vm447, %v821, 0
        %v849 = vsel %vm447, %v822, 0
        %v852 = vsel %vm447, %v823, 0
        %v855 = vsel %vm447, %v824, 0
        %v858 = vsel %vm447, %v825, 0
        %v861 = vsel %vm447, %v826, 0
        %v864 = vsel %vm447, %v827, 0
        %v867 = vsel %vm447, %v828, 0
        %v870 = vsel %vm447, %v829, 0
        %v873 = vsel %vm447, %v830, 0
        %v876 = vsel %vm447, %v831, 0
        %v879 = vsel %vm447, %v832, 0
        %881 = vmatpush.msra.mxu0 0.0
        %882 = vmatpush.msra.mxu0 0.0
        %883 = vmatpush.msra.mxu0 0.0
        %884 = vmatpush.msra.mxu0 0.0
        %885 = vmatpush.msra.mxu0 0.0
        %886 = vmatpush.msra.mxu0 0.0
        %887 = vmatpush.msra.mxu0 0.0
        %888 = vmatpush.msra.mxu0 0.0
        %889 = vmatpush.msra.mxu0 0.0
        %890 = vmatpush.msra.mxu0 0.0
        %891 = vmatpush.msra.mxu0 0.0
        %892 = vmatpush.msra.mxu0 0.0
        %893 = vmatpush.msra.mxu0 0.0
        %894 = vmatpush.msra.mxu0 0.0
        %895 = vmatpush.msra.mxu0 %v304
        %896 = vmatpush.msra.mxu0 %v303
        %897 = vmatmul.f32.gmra.mxu0 %v834
        %v898 = vpop.f32.mrf.mxu0
        %v899 = vadd.f32 0.0, %v898
        %900 = vmatmul.f32.gmra.mxu0 %v837
        %v901 = vpop.f32.mrf.mxu0
        %v902 = vadd.f32 0.0, %v901
        %903 = vmatmul.f32.gmra.mxu0 %v840
        %v904 = vpop.f32.mrf.mxu0
        %v905 = vadd.f32 0.0, %v904
        %906 = vmatmul.f32.gmra.mxu0 %v843
        %v907 = vpop.f32.mrf.mxu0
        %v908 = vadd.f32 0.0, %v907
        %909 = vmatmul.f32.gmra.mxu0 %v846
        %v910 = vpop.f32.mrf.mxu0
        %v911 = vadd.f32 0.0, %v910
        %912 = vmatmul.f32.gmra.mxu0 %v849
        %v913 = vpop.f32.mrf.mxu0
        %v914 = vadd.f32 0.0, %v913
        %915 = vmatmul.f32.gmra.mxu0 %v852
        %v916 = vpop.f32.mrf.mxu0
        %v917 = vadd.f32 0.0, %v916
        %918 = vmatmul.f32.gmra.mxu0 %v855
        %v919 = vpop.f32.mrf.mxu0
        %v920 = vadd.f32 0.0, %v919
        %921 = vmatmul.f32.gmra.mxu0 %v858
        %v922 = vpop.f32.mrf.mxu0
        %v923 = vadd.f32 0.0, %v922
        %924 = vmatmul.f32.gmra.mxu0 %v861
        %v925 = vpop.f32.mrf.mxu0
        %v926 = vadd.f32 0.0, %v925
        %927 = vmatmul.f32.gmra.mxu0 %v864
        %v928 = vpop.f32.mrf.mxu0
        %v929 = vadd.f32 0.0, %v928
        %930 = vmatmul.f32.gmra.mxu0 %v867
        %v931 = vpop.f32.mrf.mxu0
        %v932 = vadd.f32 0.0, %v931
        %933 = vmatmul.f32.gmra.mxu0 %v870
        %v934 = vpop.f32.mrf.mxu0
        %v935 = vadd.f32 0.0, %v934
        %936 = vmatmul.f32.gmra.mxu0 %v873
        %v937 = vpop.f32.mrf.mxu0
        %v938 = vadd.f32 0.0, %v937
        %939 = vmatmul.f32.gmra.mxu0 %v876
        %v940 = vpop.f32.mrf.mxu0
        %v941 = vadd.f32 0.0, %v940
        %942 = vmatmul.f32.gmra.mxu0 %v879
        %v943 = vpop.f32.mrf.mxu0
        %v944 = vadd.f32 0.0, %v943
        %945 = vdwg.mxu0
        %946 = vst.msk [vmem:[%s279] sm:$0xff] %vm305, %v899
        %947 = vst.msk [vmem:[%s279 + $0x8] sm:$0xff] %vm305, %v902
        %948 = vst.msk [vmem:[%s279 + $0x10] sm:$0xff] %vm305, %v905
        %949 = vst.msk [vmem:[%s279 + $0x18] sm:$0xff] %vm305, %v908
        %950 = vst.msk [vmem:[%s279 + $0x20] sm:$0xff] %vm305, %v911
        %951 = vst.msk [vmem:[%s279 + $0x28] sm:$0xff] %vm305, %v914
        %952 = vst.msk [vmem:[%s279 + $0x30] sm:$0xff] %vm305, %v917
        %953 = vst.msk [vmem:[%s279 + $0x38] sm:$0xff] %vm305, %v920
        %954 = vst.msk [vmem:[%s279 + $0x40] sm:$0xff] %vm305, %v923
        %955 = vst.msk [vmem:[%s279 + $0x48] sm:$0xff] %vm305, %v926
        %956 = vst.msk [vmem:[%s279 + $0x50] sm:$0xff] %vm305, %v929
        %957 = vst.msk [vmem:[%s279 + $0x58] sm:$0xff] %vm305, %v932
        %958 = vst.msk [vmem:[%s279 + $0x60] sm:$0xff] %vm305, %v935
        %959 = vst.msk [vmem:[%s279 + $0x68] sm:$0xff] %vm305, %v938
        %960 = vst.msk [vmem:[%s279 + $0x70] sm:$0xff] %vm305, %v941
        %961 = vst.msk [vmem:[%s279 + $0x78] sm:$0xff] %vm305, %v944
        %s962 = smul.u32 %s24, 128
        %v963 = vstv %s962
        %v964 = vadd.s32 %v963, %v446
        %vm965 = vcmp.lt.s32.totalorder %v964, 512
        %v966 = vsel %vm965, 1, 0
        %v967 = vcvt.s32.f32 %v966
        %968 = vmatpush.msra.mxu0 %v832
        %969 = vmatpush.msra.mxu0 %v831
        %970 = vmatpush.msra.mxu0 %v830
        %971 = vmatpush.msra.mxu0 %v829
        %972 = vmatpush.msra.mxu0 %v828
        %973 = vmatpush.msra.mxu0 %v827
        %974 = vmatpush.msra.mxu0 %v826
        %975 = vmatpush.msra.mxu0 %v825
        %976 = vmatpush.msra.mxu0 %v824
        %977 = vmatpush.msra.mxu0 %v823
        %978 = vmatpush.msra.mxu0 %v822
        %979 = vmatpush.msra.mxu0 %v821
        %980 = vmatpush.msra.mxu0 %v820
        %981 = vmatpush.msra.mxu0 %v819
        %982 = vmatpush.msra.mxu0 %v818
        %983 = vmatpush.msra.mxu0 %v817
        %984 = vmatmul.f32.gmra.mxu0 %v967
        %v985 = vpop.f32.mrf.mxu0
        %v986 = vadd.f32 0.0, %v985
        %987 = vdwg.mxu0
        %v988 = vsub.f32 %v899, %v287
        %v989 = vsub.f32 %v902, %v288
        %v990 = vsub.f32 %v905, %v289
        %v991 = vsub.f32 %v908, %v290
        %v992 = vsub.f32 %v911, %v291
        %v993 = vsub.f32 %v914, %v292
        %v994 = vsub.f32 %v917, %v293
        %v995 = vsub.f32 %v920, %v294
        %v996 = vsub.f32 %v923, %v295
        %v997 = vsub.f32 %v926, %v296
        %v998 = vsub.f32 %v929, %v297
        %v999 = vsub.f32 %v932, %v298
        %v1000 = vsub.f32 %v935, %v299
        %v1001 = vsub.f32 %v938, %v300
        %v1002 = vsub.f32 %v941, %v301
        %v1003 = vsub.f32 %v944, %v302
        %v1004 = vmul.f32 %v988, %v988
        %v1005 = vmul.f32 %v989, %v989
        %v1006 = vmul.f32 %v990, %v990
        %v1007 = vmul.f32 %v991, %v991
        %v1008 = vmul.f32 %v992, %v992
        %v1009 = vmul.f32 %v993, %v993
        %v1010 = vmul.f32 %v994, %v994
        %v1011 = vmul.f32 %v995, %v995
        %v1012 = vmul.f32 %v996, %v996
        %v1013 = vmul.f32 %v997, %v997
        %v1014 = vmul.f32 %v998, %v998
        %v1015 = vmul.f32 %v999, %v999
        %v1016 = vmul.f32 %v1000, %v1000
        %v1017 = vmul.f32 %v1001, %v1001
        %v1018 = vmul.f32 %v1002, %v1002
        %v1019 = vmul.f32 %v1003, %v1003
        %1020 = vmatpush.msra.mxu0 %v1019
        %1021 = vmatpush.msra.mxu0 %v1018
        %1022 = vmatpush.msra.mxu0 %v1017
        %1023 = vmatpush.msra.mxu0 %v1016
        %1024 = vmatpush.msra.mxu0 %v1015
        %1025 = vmatpush.msra.mxu0 %v1014
        %1026 = vmatpush.msra.mxu0 %v1013
        %1027 = vmatpush.msra.mxu0 %v1012
        %1028 = vmatpush.msra.mxu0 %v1011
        %1029 = vmatpush.msra.mxu0 %v1010
        %1030 = vmatpush.msra.mxu0 %v1009
        %1031 = vmatpush.msra.mxu0 %v1008
        %1032 = vmatpush.msra.mxu0 %v1007
        %1033 = vmatpush.msra.mxu0 %v1006
        %1034 = vmatpush.msra.mxu0 %v1005
        %1035 = vmatpush.msra.mxu0 %v1004
        %1036 = vmatmul.f32.gmra.mxu0 %v967
        %v1037 = vpop.f32.mrf.mxu0
        %v1038 = vadd.f32 0.0, %v1037
        %1039 = vdwg.mxu0
        %vm1040 = vcmask 122880
        %1041 = vst.msk [vmem:[%s262] sm:$0x1] %vm1040, %v986
        %vm1042 = vcmask 24576
        %1043 = vst.msk [vmem:[%s268] sm:$0x1] %vm1042, %v1038
        %s1044 = smul.u32 16, %s24
        %p1045 = scmp.lt.s32.totalorder %s1044, 63
        %s1046 = scalar_select %p1045, %s1044, 63
        %s1047 = smul.addr %s1046, 8
        %s1048 = scalar_lea.vmem %s3, %s1047
        %s1049 = smul.u32 16, %s24
        %p1050 = scmp.lt.s32.totalorder %s1049, 63
        %s1051 = scalar_select %p1050, %s1049, 63
        %s1052 = smul.addr %s1051, 8
        %s1053 = scalar_lea.vmem %s4, %s1052
        %s1054 = sand.u32 %s152, 1
        %s1055 = scalar_lea.sflag [#allocation3], %s1054
        %s1056 = sand.u32 %s152, 1
        %s1057 = scalar_lea.vmem [#allocation2], %s1056
        %s1058 = sand.u32 %s178, 1
        %s1059 = scalar_lea.sflag [#allocation5], %s1058
        %s1060 = sand.u32 %s178, 1
        %s1061 = scalar_lea.vmem [#allocation4], %s1060
        // Predicated region
        $region33: #{tpu_custom_call.1} parent=31 // pred_check
          %p1062 = pneg %p110
        $region34: #{tpu_custom_call.1} parent=31 // pred_check_branch
          %1064 = sbr.rel (%p1062) target = $region36
        $region35: #{tpu_custom_call.1} parent=31 // pred_region
          %s1065 = smul.u32 16, %s24
        $region36: #{tpu_custom_call.1} parent=31 // pred_fallthru
          _
        // Predicated region
        $region37: #{tpu_custom_call.1} parent=31 // pred_check
          %p1066 = pneg %p136
        $region38: #{tpu_custom_call.1} parent=31 // pred_check_branch
          %1068 = sbr.rel (%p1066) target = $region40
        $region39: #{tpu_custom_call.1} parent=31 // pred_region
          %s1069 = smul.u32 16, %s24
        $region40: #{tpu_custom_call.1} parent=31 // pred_fallthru
          _
        // Predicated region
        $region41: #{tpu_custom_call.1} parent=31 // pred_check
          %p1070 = pneg %p162
        $region42: #{tpu_custom_call.1} parent=31 // pred_check_branch
          %1072 = sbr.rel (%p1070) target = $region44
        $region43: #{tpu_custom_call.1} parent=31 // pred_region
          %1074 = vsyncadd %s1055, 0
          %s1075 = scalar_lea.hbm %s5, %s24
          %s1077 = sshll.u32 %s1057, 4
          %s1078 = int_to_ptr.vmem [resolvable:$true] %s1077
          %s1079 = sshll.u32 %s1075, 4
          %s1080 = int_to_ptr.hbm [resolvable:$true] %s1079
          %1082 = dma.vmem_to_hbm [thread:$0]  %s1078, 16, %s1080, %s1055
        $region44: #{tpu_custom_call.1} parent=31 // pred_fallthru
          _
        // Predicated region
        $region45: #{tpu_custom_call.1} parent=31 // pred_check
          %p1083 = pneg %p188
        $region46: #{tpu_custom_call.1} parent=31 // pred_check_branch
          %1085 = sbr.rel (%p1083) target = $region48
        $region47: #{tpu_custom_call.1} parent=31 // pred_region
          %1087 = vsyncadd %s1059, 0
          %s1088 = scalar_lea.hbm %s6, %s24
          %s1090 = sshll.u32 %s1061, 4
          %s1091 = int_to_ptr.vmem [resolvable:$true] %s1090
          %s1092 = sshll.u32 %s1088, 4
          %s1093 = int_to_ptr.hbm [resolvable:$true] %s1092
          %1095 = dma.vmem_to_hbm [thread:$0]  %s1091, 16, %s1093, %s1059
        $region48: #{tpu_custom_call.1} parent=31 // pred_fallthru
          _
      $region32: #{tpu_custom_call.1} parent=5 // pred_fallthru
        _
      %p1096 = scmp.le.s32.totalorder 2, %s19
      // Predicated region
      $region49: #{tpu_custom_call.1} parent=5 // pred_check
        %p1097 = pneg %p1096
      $region50: #{tpu_custom_call.1} parent=5 // pred_check_branch
        %1099 = sbr.rel (%p1097) target = $region52
      $region51: #{tpu_custom_call.1} parent=5 // pred_region
        %s1100 = ssub.s32 %s19, 2
        // Predicated region
        $region53: #{tpu_custom_call.1} parent=51 // pred_check
          %p1101 = pneg %p116
        $region54: #{tpu_custom_call.1} parent=51 // pred_check_branch
          %1103 = sbr.rel (%p1101) target = $region56
        $region55: #{tpu_custom_call.1} parent=51 // pred_region
          %s1104 = smul.u32 16, %s25
          %p1105 = scmp.lt.s32.totalorder %s1104, 63
          %s1106 = scalar_select %p1105, %s1104, 63
          %s1107 = smul.addr %s1106, 8
          %s1108 = scalar_lea.vmem %s3, %s1107
        $region56: #{tpu_custom_call.1} parent=51 // pred_fallthru
          _
        // Predicated region
        $region57: #{tpu_custom_call.1} parent=51 // pred_check
          %p1109 = pneg %p142
        $region58: #{tpu_custom_call.1} parent=51 // pred_check_branch
          %1111 = sbr.rel (%p1109) target = $region60
        $region59: #{tpu_custom_call.1} parent=51 // pred_region
          %s1112 = smul.u32 16, %s25
          %p1113 = scmp.lt.s32.totalorder %s1112, 63
          %s1114 = scalar_select %p1113, %s1112, 63
          %s1115 = smul.addr %s1114, 8
          %s1116 = scalar_lea.vmem %s4, %s1115
        $region60: #{tpu_custom_call.1} parent=51 // pred_fallthru
          _
        // Predicated region
        $region61: #{tpu_custom_call.1} parent=51 // pred_check
          %p1117 = pneg %p168
        $region62: #{tpu_custom_call.1} parent=51 // pred_check_branch
          %1119 = sbr.rel (%p1117) target = $region64
        $region63: #{tpu_custom_call.1} parent=51 // pred_region
          %s1120 = sand.u32 %s153, 1
          %s1121 = scalar_lea.sflag [#allocation3], %s1120
          %s1122 = sand.u32 %s153, 1
          %s1123 = scalar_lea.vmem [#allocation2], %s1122
          %1125 = dma.done %s1121, 16
        $region64: #{tpu_custom_call.1} parent=51 // pred_fallthru
          _
        // Predicated region
        $region65: #{tpu_custom_call.1} parent=51 // pred_check
          %p1126 = pneg %p194
        $region66: #{tpu_custom_call.1} parent=51 // pred_check_branch
          %1128 = sbr.rel (%p1126) target = $region68
        $region67: #{tpu_custom_call.1} parent=51 // pred_region
          %s1129 = sand.u32 %s179, 1
          %s1130 = scalar_lea.sflag [#allocation5], %s1129
          %s1131 = sand.u32 %s179, 1
          %s1132 = scalar_lea.vmem [#allocation4], %s1131
          %1134 = dma.done %s1130, 16
        $region68: #{tpu_custom_call.1} parent=51 // pred_fallthru
          _
      $region52: #{tpu_custom_call.1} parent=5 // pred_fallthru
        _
    $region6: #{tpu_custom_call.1} parent=1 // loop_footer
      %s23 = sadd.s32 1, %s19
    $region7: #{tpu_custom_call.1} parent=1 // loop_footer_branch
      %18 = sbr.rel target = $region3
    $region8: #{tpu_custom_call.1} parent=1 // loop_exit
      _
    %1135 = vsyncpa [#allocation3], 1
    %s1136 = scalar_lea.sflag [#allocation3], 1
    %1137 = vsyncpa %s1136, 1
    %1138 = vsyncpa [#allocation5], 1
    %s1139 = scalar_lea.sflag [#allocation5], 1
    %1140 = vsyncpa %s1139, 1

</llo_original>
